<compile_context>
chip_gen: v5e
topology: v5e:2x2
jax: 0.10.0
libtpu: 0.0.40
codegen_flags: <defaults>
</compile_context>

<pallas_src>
import functools

import jax
import jax.numpy as jnp
from jax.experimental import pallas as pl
from jax.experimental.pallas import tpu as pltpu

Q1 = 0.45
Q9 = 1.0 - Q1

_LANES = 128
_TILE_ROWS = 1024      # (1024, 128) f32 block = 512 KiB per operand
_SMALL_ROWS = 512      # <= (512, 128) per operand: single ungridded block


def _cdiv(a, b):
    return -(-a // b)


def _round_up(a, b):
    return _cdiv(a, b) * b


def _pinball_elem(a, t, v):
    """Elementwise loss_10 + loss_90.  max(Q*q, (Q-1)*q) == Q*q + relu(-q) (exact)."""
    q10 = t - a + v          # target - (angle - var)
    q90 = t - a - v          # target - (angle + var)
    return (Q1 * q10 + Q9 * q90
            + jnp.maximum(-q10, 0.0) + jnp.maximum(-q90, 0.0))


# ---------------------------------------------------------------------------
# Kernels
# ---------------------------------------------------------------------------

def _none_kernel(a_ref, t_ref, v_ref, out_ref):
    # Elementwise loss; lane/sublane-dense (rows, 128) blocks in and out.
    out_ref[...] = _pinball_elem(a_ref[...], t_ref[...], v_ref[...])


def _reduce_small_kernel(a_ref, t_ref, v_ref, out_ref, *, scale):
    # Whole problem in one block; the mean/sum scale is a compile-time constant.
    out_ref[0, 0] = jnp.sum(_pinball_elem(a_ref[...], t_ref[...], v_ref[...])) * scale


def _reduce_tiled_kernel(a_ref, t_ref, v_ref, out_ref, acc_ref):
    # Grid = (2, tiles_per_half): leading axis 'parallel' (v7x megacore split),
    # trailing axis 'arbitrary' accumulating into an SMEM scalar scratch (P3).
    @pl.when(pl.program_id(1) == 0)
    def _():
        acc_ref[0] = jnp.float32(0.0)
    acc_ref[0] += jnp.sum(_pinball_elem(a_ref[...], t_ref[...], v_ref[...]))
    out_ref[0, 0] = acc_ref[0]


# ---------------------------------------------------------------------------
# Wrapper
# ---------------------------------------------------------------------------

def _pack_operands(output, target, var, rows_padded):
    """Row-major (interleaved) lane-dense packing to three (rows_padded, 128) f32 arrays.

    target (and output when it already has exactly 2 columns) is just a
    reshape / zero-pad; var is expanded to the per-element interleaved pattern
    here because that interleave is not cleanly expressible in-kernel.
    Zero-padded tail elements give q10 = q90 = 0 -> zero loss contribution.
    """
    n = target.shape[0]
    angle = output[:, :2]
    flats = (angle.astype(jnp.float32).reshape(-1),
             target.astype(jnp.float32).reshape(-1),
             jnp.broadcast_to(var.astype(jnp.float32).reshape(n, 1), (n, 2)).reshape(-1))
    total = rows_padded * _LANES
    packed = []
    for f in flats:
        pad = total - f.shape[0]
        if pad:
            f = jnp.pad(f, (0, pad))
        packed.append(f.reshape(rows_padded, _LANES))
    return packed


def pinball_loss(output, target, var, reduction="mean"):
    assert reduction in ("mean", "sum", "none")
    n, two = target.shape
    assert two == 2
    assert output.shape[0] == n and output.shape[1] >= 2

    flat_len = 2 * n
    rows = _cdiv(flat_len, _LANES)
    scale = 1.0 / float(flat_len) if reduction == "mean" else 1.0
    vmem_full = pl.BlockSpec(memory_space=pltpu.MemorySpace.VMEM)

    if reduction == "none":
        if rows <= _SMALL_ROWS:
            rows_padded = rows
            a, t, v = _pack_operands(output, target, var, rows_padded)
            res = pl.pallas_call(
                _none_kernel,
                out_shape=jax.ShapeDtypeStruct((rows_padded, _LANES), jnp.float32),
                in_specs=[vmem_full] * 3,
                out_specs=vmem_full,
            )(a, t, v)
        else:
            # >= 2 tiles so v7x's two TensorCores both get work.
            num_tiles = max(2, _cdiv(rows, _TILE_ROWS))
            tile_rows = _round_up(_cdiv(rows, num_tiles), 8)
            rows_padded = num_tiles * tile_rows
            a, t, v = _pack_operands(output, target, var, rows_padded)
            blk = pl.BlockSpec((tile_rows, _LANES), lambda i: (i, 0))
            res = pl.pallas_call(
                _none_kernel,
                out_shape=jax.ShapeDtypeStruct((rows_padded, _LANES), jnp.float32),
                grid=(num_tiles,),
                in_specs=[blk] * 3,
                out_specs=blk,
                compiler_params=pltpu.CompilerParams(
                    dimension_semantics=("parallel",)),
            )(a, t, v)
        # Already row-major: just drop the zero padding (no transpose pass).
        return res.reshape(-1)[:flat_len].reshape(n, 2)

    # ---- reduction == 'mean' / 'sum' ----
    if rows <= _SMALL_ROWS:
        a, t, v = _pack_operands(output, target, var, rows)
        res = pl.pallas_call(
            functools.partial(_reduce_small_kernel, scale=scale),
            out_shape=jax.ShapeDtypeStruct((1, 1), jnp.float32),
            in_specs=[vmem_full] * 3,
            out_specs=pl.BlockSpec(memory_space=pltpu.MemorySpace.SMEM),
        )(a, t, v)
        return res[0, 0]

    # Large N: (2, tiles_per_half) grid, per-half SMEM scalar outputs.
    halves = 2
    tiles_per_half = _cdiv(_cdiv(rows, halves), _TILE_ROWS)
    tile_rows = _round_up(_cdiv(rows, halves * tiles_per_half), 8)
    rows_padded = halves * tiles_per_half * tile_rows
    a, t, v = _pack_operands(output, target, var, rows_padded)
    in_blk = pl.BlockSpec((tile_rows, _LANES),
                          lambda i, k: (i * tiles_per_half + k, 0))
    partials = pl.pallas_call(
        _reduce_tiled_kernel,
        out_shape=jax.ShapeDtypeStruct((halves, 1), jnp.float32),
        grid=(halves, tiles_per_half),
        in_specs=[in_blk] * 3,
        out_specs=pl.BlockSpec((1, 1), lambda i, k: (i, 0),
                               memory_space=pltpu.MemorySpace.SMEM),
        scratch_shapes=[pltpu.SMEM((1,), jnp.float32)],
        compiler_params=pltpu.CompilerParams(
            dimension_semantics=("parallel", "arbitrary")),
    )(a, t, v)
    return jnp.sum(partials) * scale


# ---------------------------------------------------------------------------
# Pure-JAX reference mirroring the PyTorch module
# ---------------------------------------------------------------------------

def _reference(output, target, var, reduction="mean"):
    angle_o = output[:, :2]
    var_o = jnp.broadcast_to(var.reshape(-1, 1), (var.shape[0], 2))
    q_10 = target - (angle_o - var_o)
    q_90 = target - (angle_o + var_o)
    loss_10 = jnp.maximum(Q1 * q_10, (Q1 - 1.0) * q_10)
    loss_90 = jnp.maximum(Q9 * q_90, (Q9 - 1.0) * q_90)
    red = {"mean": jnp.mean, "sum": jnp.sum, "none": lambda x: x}[reduction]
    return red(loss_10) + red(loss_90)


if __name__ == "__main__":
    key = jax.random.PRNGKey(0)
    k1, k2, k3, k4, k5, k6 = jax.random.split(key, 6)

    loss_fn = jax.jit(pinball_loss, static_argnames=("reduction",))

    # Module-typical tiny batch: N = 8 samples, 4 output channels.
    N, C = 8, 4
    output = jax.random.normal(k1, (N, C), dtype=jnp.float32)
    target = jax.random.normal(k2, (N, 2), dtype=jnp.float32)
    var = jax.random.uniform(k3, (N,), dtype=jnp.float32)

    for red, rtol, atol in (("mean", 1e-5, 1e-6),
                            ("sum", 1e-5, 1e-6),
                            ("none", 1e-5, 1e-5)):
        got = jax.block_until_ready(loss_fn(output, target, var, reduction=red))
        want = _reference(output, target, var, red)
        assert jnp.allclose(got, want, rtol=rtol, atol=atol), (red, got, want)

    # Larger case exercising the tiled 'parallel'/'arbitrary' paths, the SMEM
    # accumulator (multiple inner steps) and zero padding.
    N2 = 140000
    output2 = jax.random.normal(k4, (N2, C), dtype=jnp.float32)
    target2 = jax.random.normal(k5, (N2, 2), dtype=jnp.float32)
    var2 = jax.random.uniform(k6, (N2,), dtype=jnp.float32)

    for red, rtol, atol in (("mean", 1e-4, 1e-5),
                            ("sum", 1e-4, 1e-1),
                            ("none", 1e-5, 1e-5)):
        got = jax.block_until_ready(loss_fn(output2, target2, var2, reduction=red))
        want = _reference(output2, target2, var2, red)
        assert jnp.allclose(got, want, rtol=rtol, atol=atol), (red, got, want)

    print("KERNEL_OK")
</pallas_src>

<mosaic_0001>
module attributes {stable_mosaic.version = 11 : i64} {
  func.func @_reduce_small_kernel(%arg0: memref<1x128xf32, #tpu.memory_space<vmem>>, %arg1: memref<1x128xf32, #tpu.memory_space<vmem>>, %arg2: memref<1x128xf32, #tpu.memory_space<vmem>>, %arg3: memref<1x1xf32, #tpu.memory_space<smem>>) attributes {dimension_semantics = [], scalar_prefetch = 0 : i64, scratch_operands = 0 : i64, tpu.core_type = #tpu.core_type<tc>} {
    %c0 = arith.constant 0 : index
    %c0_0 = arith.constant 0 : index
    %0 = vector.load %arg0[%c0, %c0_0] : memref<1x128xf32, #tpu.memory_space<vmem>>, vector<1x128xf32>
    %c0_1 = arith.constant 0 : index
    %c0_2 = arith.constant 0 : index
    %1 = vector.load %arg1[%c0_1, %c0_2] : memref<1x128xf32, #tpu.memory_space<vmem>>, vector<1x128xf32>
    %c0_3 = arith.constant 0 : index
    %c0_4 = arith.constant 0 : index
    %2 = vector.load %arg2[%c0_3, %c0_4] : memref<1x128xf32, #tpu.memory_space<vmem>>, vector<1x128xf32>
    %3 = arith.subf %1, %0 : vector<1x128xf32>
    %4 = arith.addf %3, %2 : vector<1x128xf32>
    %5 = arith.subf %1, %0 : vector<1x128xf32>
    %6 = arith.subf %5, %2 : vector<1x128xf32>
    %cst = arith.constant 4.500000e-01 : f32
    %7 = vector.broadcast %cst : f32 to vector<1x128xf32>
    %8 = arith.mulf %7, %4 : vector<1x128xf32>
    %cst_5 = arith.constant 5.500000e-01 : f32
    %9 = vector.broadcast %cst_5 : f32 to vector<1x128xf32>
    %10 = arith.mulf %9, %6 : vector<1x128xf32>
    %11 = arith.addf %8, %10 : vector<1x128xf32>
    %cst_6 = arith.constant 0.000000e+00 : f32
    %12 = vector.broadcast %cst_6 : f32 to vector<1x128xf32>
    %13 = arith.subf %12, %4 : vector<1x128xf32>
    %cst_7 = arith.constant 0.000000e+00 : f32
    %14 = vector.broadcast %cst_7 : f32 to vector<1x128xf32>
    %15 = arith.maximumf %13, %14 : vector<1x128xf32>
    %16 = arith.addf %11, %15 : vector<1x128xf32>
    %cst_8 = arith.constant 0.000000e+00 : f32
    %17 = vector.broadcast %cst_8 : f32 to vector<1x128xf32>
    %18 = arith.subf %17, %6 : vector<1x128xf32>
    %cst_9 = arith.constant 0.000000e+00 : f32
    %19 = vector.broadcast %cst_9 : f32 to vector<1x128xf32>
    %20 = arith.maximumf %18, %19 : vector<1x128xf32>
    %21 = arith.addf %16, %20 : vector<1x128xf32>
    %22 = vector.shape_cast %21 : vector<1x128xf32> to vector<1x1x128xf32>
    %cst_10 = arith.constant dense<0.000000e+00> : vector<1xf32>
    %23 = vector.multi_reduction <add>, %22, %cst_10 [1, 2] : vector<1x1x128xf32> to vector<1xf32>
    %24 = vector.shape_cast %23 : vector<1xf32> to vector<1x1x1xf32>
    %25 = vector.extract %24[0, 0, 0] : f32 from vector<1x1x1xf32>
    %cst_11 = arith.constant 6.250000e-02 : f32
    %26 = arith.mulf %25, %cst_11 : f32
    %c0_12 = arith.constant 0 : index
    %c0_13 = arith.constant 0 : index
    %27 = memref.load %arg3[%c0_12, %c0_13] : memref<1x1xf32, #tpu.memory_space<smem>>
    memref.store %26, %arg3[%c0_12, %c0_13] : memref<1x1xf32, #tpu.memory_space<smem>>
    return
  }
}

</mosaic_0001>

<llo_original>
// kernel: pinball_loss.1
$region0: #{pinball_loss.1}
  #allocation0 [shape = 'u32[]', space=smem, size = 0x4, offset = 0x4, fixed_abs, tag = 'smem constant byte address 0x4 - core index']
  #allocation1 [shape = 'u32[72,128]{1,0:T(1,128)}', space=vmem, size = 0x9000, scoped, tag = 'internal scratch']
  %s0 = inlined_call_operand.vmem [shape: f32[1,128], index: 0, kind: input, shape index: {}]
  %s1 = inlined_call_operand.vmem [shape: f32[1,128], index: 1, kind: input, shape index: {}]
  %s2 = inlined_call_operand.vmem [shape: f32[1,128], index: 2, kind: input, shape index: {}]
  %s3 = inlined_call_operand.hbm [shape: f32[1,1], index: 3, kind: output, shape index: {}]
  %s4 = sld [smem:[#allocation0]]
  $region22: #{pinball_loss.1} parent=0
    _
  %s6 = ssub.s32 1, %s4
  %s7 = scalar_select 0, %s6, %s4
  $region1: #{pinball_loss.1} parent=0
    #allocation2 [shape = 'u8[512]{0}', space=smem, size = 0x200, scoped, tag = 'output window, operand 0, single buffered']
    #allocation3 [shape = 's32[1]{0}', space=sflag, size = 0x4, scoped, tag = 'scoped memory for pinball_loss.1']
    %8 = vsyncpa [#allocation3], 0
    // Predicated region
    $region2: #{pinball_loss.1} parent=1 // pred_check
      _
    $region3: #{pinball_loss.1} parent=1 // pred_check_branch
      %10 = sbr.rel (0) target = $region5
    $region4: #{pinball_loss.1} parent=1 // pred_region
      _
    $region5: #{pinball_loss.1} parent=1 // pred_fallthru
      _
    // Predicated region
    $region6: #{pinball_loss.1} parent=1 // pred_check
      _
    $region7: #{pinball_loss.1} parent=1 // pred_check_branch
      %12 = sbr.rel (0) target = $region9
    $region8: #{pinball_loss.1} parent=1 // pred_region
      _
    $region9: #{pinball_loss.1} parent=1 // pred_fallthru
      _
    // Predicated region
    $region10: #{pinball_loss.1} parent=1 // pred_check
      _
    $region11: #{pinball_loss.1} parent=1 // pred_check_branch
      %14 = sbr.rel (0) target = $region13
    $region12: #{pinball_loss.1} parent=1 // pred_region
      _
    $region13: #{pinball_loss.1} parent=1 // pred_fallthru
      _
    %v15 = vld [vmem:[%s0] sm:$0x1]
    %v16 = vld [vmem:[%s1] sm:$0x1]
    %v17 = vld [vmem:[%s2] sm:$0x1]
    %v18 = vsub.f32 %v16, %v15
    %v19 = vadd.f32 %v18, %v17
    %v20 = vsub.f32 %v18, %v17
    %v21 = vmul.f32 %v19, 0.45
    %v22 = vmul.f32 %v20, 0.55
    %v23 = vadd.f32 %v21, %v22
    %v24 = vsub.f32 0.0, %v19
    %v25 = vmax.f32 %v24, 0.0
    %v26 = vadd.f32 %v23, %v25
    %v27 = vsub.f32 0.0, %v20
    %v28 = vmax.f32 %v27, 0.0
    %v29 = vadd.f32 %v26, %v28
    %vm30 = vcmask 1040384
    %v31 = vsel %vm30, %v29, 0.0
    %32 = vadd.xlane.f32.xlu0 %v31
    %v33 = vpop.xlane.xlu0 %32
    %v34 = vrot.slane %v33, 4
    %v35 = vadd.f32 %v33, %v34
    %v36 = vrot.slane %v35, 2
    %v37 = vadd.f32 %v35, %v36
    %v38 = vrot.slane %v37, 1
    %v39 = vadd.f32 %v37, %v38
    %s40 = vtos %v39
    %s41 = smul.f32 %s40, 0.0625
    %s42 = scalar_lea.smem [#allocation2], 0
    %43 = sst [smem:[%s42]] %s41
    // Predicated region
    $region14: #{pinball_loss.1} parent=1 // pred_check
      _
    $region15: #{pinball_loss.1} parent=1 // pred_check_branch
      %45 = sbr.rel (0) target = $region17
    $region16: #{pinball_loss.1} parent=1 // pred_region
      %47 = vsyncadd [#allocation3], 0
      %s49 = sshll.u32 %s3, 4
      %s50 = int_to_ptr.hbm [resolvable:$true] %s49
      %52 = dma.smem_to_hbm [#allocation2], 16, %s50, [#allocation3]
    $region17: #{pinball_loss.1} parent=1 // pred_fallthru
      _
    // Predicated region
    $region18: #{pinball_loss.1} parent=1 // pred_check
      _
    $region19: #{pinball_loss.1} parent=1 // pred_check_branch
      %54 = sbr.rel (0) target = $region21
    $region20: #{pinball_loss.1} parent=1 // pred_region
      %56 = dma.done [#allocation3], 16
    $region21: #{pinball_loss.1} parent=1 // pred_fallthru
      _
    %57 = sfence
    %58 = vsyncpa [#allocation3], 1

</llo_original>
